<compile_context>
chip_gen: v6e
topology: v6e:2x2x1
jax: 0.10.0
libtpu: 0.0.40
codegen_flags: <defaults>
</compile_context>

<pallas_src>
import jax
import jax.numpy as jnp
from jax.experimental import pallas as pl
from jax.experimental.pallas import tpu as pltpu

_EPS = 1e-5


def _valuenet_kernel(x_ref, w1_ref, w2_ref, p_ref, o_ref):
    # p_ref rows: 0=gamma1, 1=beta1, 2=gamma2, 3=beta2, 4=w3 (lane-dense), 5=b3 (lane-broadcast)
    eps = jnp.float32(_EPS)
    inv_b = jnp.float32(1.0 / x_ref.shape[0])
    mxu_dtype = w1_ref.dtype  # bf16 by default; f32 if the full-precision path was packed

    def bn_relu(h, g, be):
        # One-pass stats: mean and E[h^2]; biased var = E[h^2] - mean^2 (clamped >= 0 for safety).
        s1 = jnp.sum(h, axis=0, keepdims=True) * inv_b            # (1, 128) batch mean
        s2 = jnp.sum(h * h, axis=0, keepdims=True) * inv_b        # (1, 128) E[h^2]
        var = jnp.maximum(s2 - s1 * s1, 0.0)
        scale = g * jax.lax.rsqrt(var + eps)                      # (1, 128) — rsqrt on EUP
        shift = be - s1 * scale                                   # (1, 128)
        return jnp.maximum(h * scale + shift, 0.0)                # one mul + one add on (B,128)

    # layer1 + bn1 + relu (Linear bias omitted: exactly cancelled by BN mean subtraction)
    h = jnp.dot(x_ref[...].astype(mxu_dtype), w1_ref[...],
                preferred_element_type=jnp.float32)               # (B, 128) f32 accumulate
    h = bn_relu(h, p_ref[0:1, :], p_ref[1:2, :])

    # layer2 + bn2 + relu
    h = jnp.dot(h.astype(mxu_dtype), w2_ref[...],
                preferred_element_type=jnp.float32)               # (B, 128) f32 accumulate
    h = bn_relu(h, p_ref[2:3, :], p_ref[3:4, :])

    # layer3 value head: lane-dense weight row + XLU lane reduction (no N=1 MXU matmul)
    w3 = p_ref[4:5, :]                                            # (1, 128) f32
    b3 = p_ref[5:6, :]                                            # (1, 128), every lane = b3
    out = jnp.sum(h * w3, axis=-1, keepdims=True) + b3[:, :1]     # (B, 1)
    o_ref[...] = out.astype(o_ref.dtype)


@jax.jit
def value_net_forward(x, packed):
    """x: (B, observation_dim) float32. packed: dict from pack_value_net (prebuilt, no per-call packing)."""
    B = x.shape[0]
    vmem = pl.BlockSpec(memory_space=pltpu.MemorySpace.VMEM)
    return pl.pallas_call(
        _valuenet_kernel,
        out_shape=jax.ShapeDtypeStruct((B, 1), jnp.float32),
        in_specs=[vmem, vmem, vmem, vmem],
        out_specs=vmem,
    )(x, packed["w1"], packed["w2"], packed["slab"])


def init_value_net_params(key, observation_dim, hidden=128):
    """PyTorch-style uniform(+-1/sqrt(fan_in)) init, f32 masters. Linear weights stored as (in, out).
    b1/b2 exist for the reference model but are NOT needed by the kernel (bias before
    training-mode BN is mathematically a no-op)."""
    ks = jax.random.split(key, 6)

    def linear(kw, kb, fan_in, fan_out):
        bound = 1.0 / jnp.sqrt(jnp.float32(fan_in))
        w = jax.random.uniform(kw, (fan_in, fan_out), jnp.float32, -bound, bound)
        b = jax.random.uniform(kb, (1, fan_out), jnp.float32, -bound, bound)
        return w, b

    w1, b1 = linear(ks[0], ks[1], observation_dim, hidden)
    w2, b2 = linear(ks[2], ks[3], hidden, hidden)
    w3, b3 = linear(ks[4], ks[5], hidden, 1)

    return {
        "w1": w1, "b1": b1,
        "g1": jnp.ones((1, hidden), jnp.float32), "be1": jnp.zeros((1, hidden), jnp.float32),
        "w2": w2, "b2": b2,
        "g2": jnp.ones((1, hidden), jnp.float32), "be2": jnp.zeros((1, hidden), jnp.float32),
        "w3": w3, "b3": b3,
    }


def pack_value_net(params, weight_dtype=jnp.bfloat16):
    """ONE-TIME packing (hoisted out of the per-call path):
      * w1/w2 cast to the MXU storage dtype (bf16 by default; pass jnp.float32 for exact-f32),
      * all small per-layer vectors packed into a single (6, hidden) f32 slab -> one DMA."""
    hidden = params["w1"].shape[1]
    slab = jnp.concatenate(
        [
            params["g1"], params["be1"],
            params["g2"], params["be2"],
            params["w3"].reshape(1, hidden),                           # head weight, lane-dense
            jnp.broadcast_to(params["b3"].reshape(1, 1), (1, hidden)), # scalar head bias, broadcast
        ],
        axis=0,
    ).astype(jnp.float32)
    return {
        "w1": params["w1"].astype(weight_dtype),
        "w2": params["w2"].astype(weight_dtype),
        "slab": slab,
    }


def value_net_ref(x, params, weight_dtype=jnp.bfloat16, eps=_EPS):
    """Plain-JAX reference mirroring the PyTorch forward (training-mode BN, biases included).
    Matmul operands are round-tripped through weight_dtype so the check compares against exactly
    the low-precision weights the kernel consumes (pass jnp.float32 for the full-precision path)."""
    def q(a):
        return a.astype(weight_dtype).astype(jnp.float32)

    def bn_relu(h, g, be):
        m = jnp.mean(h, axis=0, keepdims=True)
        v = jnp.mean((h - m) ** 2, axis=0, keepdims=True)
        return jnp.maximum((h - m) / jnp.sqrt(v + eps) * g + be, 0.0)

    h = bn_relu(q(x) @ q(params["w1"]) + params["b1"], params["g1"], params["be1"])
    h = bn_relu(q(h) @ q(params["w2"]) + params["b2"], params["g2"], params["be2"])
    return h @ params["w3"] + params["b3"]


if __name__ == "__main__":
    B, OBS_DIM = 8, 32
    key = jax.random.PRNGKey(0)
    k_x, k_p = jax.random.split(key)

    x = jax.random.normal(k_x, (B, OBS_DIM), dtype=jnp.float32)
    params = init_value_net_params(k_p, OBS_DIM)
    packed = pack_value_net(params)   # one-time: slab concat + bf16 weight cast off the hot path

    out = jax.block_until_ready(value_net_forward(x, packed))
    ref = value_net_ref(x, params)

    assert out.shape == (B, 1), out.shape
    assert jnp.allclose(out, ref, atol=2e-4, rtol=2e-4), (out, ref)

    print("KERNEL_OK")
</pallas_src>

<mosaic_0001>
module attributes {stable_mosaic.version = 11 : i64} {
  func.func @_valuenet_kernel(%arg0: memref<8x32xf32, #tpu.memory_space<vmem>>, %arg1: memref<32x128xbf16, #tpu.memory_space<vmem>>, %arg2: memref<128x128xbf16, #tpu.memory_space<vmem>>, %arg3: memref<6x128xf32, #tpu.memory_space<vmem>>, %arg4: memref<8x1xf32, #tpu.memory_space<vmem>>) attributes {dimension_semantics = [], scalar_prefetch = 0 : i64, scratch_operands = 0 : i64, tpu.core_type = #tpu.core_type<tc>} {
    %c0 = arith.constant 0 : index
    %c0_0 = arith.constant 0 : index
    %0 = vector.load %arg0[%c0, %c0_0] : memref<8x32xf32, #tpu.memory_space<vmem>>, vector<8x32xf32>
    %1 = arith.truncf %0 : vector<8x32xf32> to vector<8x32xbf16>
    %c0_1 = arith.constant 0 : index
    %c0_2 = arith.constant 0 : index
    %2 = vector.load %arg1[%c0_1, %c0_2] : memref<32x128xbf16, #tpu.memory_space<vmem>>, vector<32x128xbf16>
    %cst = arith.constant dense<0.000000e+00> : vector<8x128xf32>
    %3 = tpu.matmul %1, %2, %cst {dimension_numbers = #tpu.dot_dimension_numbers<[1], [0], [0], [1], [0, 0, 1, 1], [], []>} : vector<8x32xbf16>, vector<32x128xbf16>, vector<8x128xf32> -> vector<8x128xf32>
    %c0_3 = arith.constant 0 : index
    %c0_4 = arith.constant 0 : index
    %4 = vector.load %arg3[%c0_3, %c0_4] : memref<6x128xf32, #tpu.memory_space<vmem>>, vector<1x128xf32>
    %c1 = arith.constant 1 : index
    %c0_5 = arith.constant 0 : index
    %5 = vector.load %arg3[%c1, %c0_5] : memref<6x128xf32, #tpu.memory_space<vmem>>, vector<1x128xf32>
    %cst_6 = arith.constant dense<0.000000e+00> : vector<128xf32>
    %6 = vector.multi_reduction <add>, %3, %cst_6 [0] : vector<8x128xf32> to vector<128xf32>
    %7 = vector.shape_cast %6 : vector<128xf32> to vector<1x128xf32>
    %cst_7 = arith.constant 1.250000e-01 : f32
    %8 = vector.broadcast %cst_7 : f32 to vector<1x128xf32>
    %9 = arith.mulf %7, %8 : vector<1x128xf32>
    %10 = arith.mulf %3, %3 : vector<8x128xf32>
    %cst_8 = arith.constant dense<0.000000e+00> : vector<128xf32>
    %11 = vector.multi_reduction <add>, %10, %cst_8 [0] : vector<8x128xf32> to vector<128xf32>
    %12 = vector.shape_cast %11 : vector<128xf32> to vector<1x128xf32>
    %cst_9 = arith.constant 1.250000e-01 : f32
    %13 = vector.broadcast %cst_9 : f32 to vector<1x128xf32>
    %14 = arith.mulf %12, %13 : vector<1x128xf32>
    %15 = arith.mulf %9, %9 : vector<1x128xf32>
    %16 = arith.subf %14, %15 : vector<1x128xf32>
    %cst_10 = arith.constant 0.000000e+00 : f32
    %17 = vector.broadcast %cst_10 : f32 to vector<1x128xf32>
    %18 = arith.maximumf %16, %17 : vector<1x128xf32>
    %cst_11 = arith.constant 9.99999974E-6 : f32
    %19 = vector.broadcast %cst_11 : f32 to vector<1x128xf32>
    %20 = arith.addf %18, %19 : vector<1x128xf32>
    %21 = math.rsqrt %20 : vector<1x128xf32>
    %22 = arith.mulf %4, %21 : vector<1x128xf32>
    %23 = arith.mulf %9, %22 : vector<1x128xf32>
    %24 = arith.subf %5, %23 : vector<1x128xf32>
    %25 = vector.broadcast %22 : vector<1x128xf32> to vector<8x128xf32>
    %26 = arith.mulf %3, %25 : vector<8x128xf32>
    %27 = vector.broadcast %24 : vector<1x128xf32> to vector<8x128xf32>
    %28 = arith.addf %26, %27 : vector<8x128xf32>
    %cst_12 = arith.constant 0.000000e+00 : f32
    %29 = vector.broadcast %cst_12 : f32 to vector<8x128xf32>
    %30 = arith.maximumf %28, %29 : vector<8x128xf32>
    %31 = arith.truncf %30 : vector<8x128xf32> to vector<8x128xbf16>
    %c0_13 = arith.constant 0 : index
    %c0_14 = arith.constant 0 : index
    %32 = vector.load %arg2[%c0_13, %c0_14] : memref<128x128xbf16, #tpu.memory_space<vmem>>, vector<128x128xbf16>
    %cst_15 = arith.constant dense<0.000000e+00> : vector<8x128xf32>
    %33 = tpu.matmul %31, %32, %cst_15 {dimension_numbers = #tpu.dot_dimension_numbers<[1], [0], [0], [1], [0, 0, 1, 1], [], []>} : vector<8x128xbf16>, vector<128x128xbf16>, vector<8x128xf32> -> vector<8x128xf32>
    %c2 = arith.constant 2 : index
    %c0_16 = arith.constant 0 : index
    %34 = vector.load %arg3[%c2, %c0_16] : memref<6x128xf32, #tpu.memory_space<vmem>>, vector<1x128xf32>
    %c3 = arith.constant 3 : index
    %c0_17 = arith.constant 0 : index
    %35 = vector.load %arg3[%c3, %c0_17] : memref<6x128xf32, #tpu.memory_space<vmem>>, vector<1x128xf32>
    %cst_18 = arith.constant dense<0.000000e+00> : vector<128xf32>
    %36 = vector.multi_reduction <add>, %33, %cst_18 [0] : vector<8x128xf32> to vector<128xf32>
    %37 = vector.shape_cast %36 : vector<128xf32> to vector<1x128xf32>
    %cst_19 = arith.constant 1.250000e-01 : f32
    %38 = vector.broadcast %cst_19 : f32 to vector<1x128xf32>
    %39 = arith.mulf %37, %38 : vector<1x128xf32>
    %40 = arith.mulf %33, %33 : vector<8x128xf32>
    %cst_20 = arith.constant dense<0.000000e+00> : vector<128xf32>
    %41 = vector.multi_reduction <add>, %40, %cst_20 [0] : vector<8x128xf32> to vector<128xf32>
    %42 = vector.shape_cast %41 : vector<128xf32> to vector<1x128xf32>
    %cst_21 = arith.constant 1.250000e-01 : f32
    %43 = vector.broadcast %cst_21 : f32 to vector<1x128xf32>
    %44 = arith.mulf %42, %43 : vector<1x128xf32>
    %45 = arith.mulf %39, %39 : vector<1x128xf32>
    %46 = arith.subf %44, %45 : vector<1x128xf32>
    %cst_22 = arith.constant 0.000000e+00 : f32
    %47 = vector.broadcast %cst_22 : f32 to vector<1x128xf32>
    %48 = arith.maximumf %46, %47 : vector<1x128xf32>
    %cst_23 = arith.constant 9.99999974E-6 : f32
    %49 = vector.broadcast %cst_23 : f32 to vector<1x128xf32>
    %50 = arith.addf %48, %49 : vector<1x128xf32>
    %51 = math.rsqrt %50 : vector<1x128xf32>
    %52 = arith.mulf %34, %51 : vector<1x128xf32>
    %53 = arith.mulf %39, %52 : vector<1x128xf32>
    %54 = arith.subf %35, %53 : vector<1x128xf32>
    %55 = vector.broadcast %52 : vector<1x128xf32> to vector<8x128xf32>
    %56 = arith.mulf %33, %55 : vector<8x128xf32>
    %57 = vector.broadcast %54 : vector<1x128xf32> to vector<8x128xf32>
    %58 = arith.addf %56, %57 : vector<8x128xf32>
    %cst_24 = arith.constant 0.000000e+00 : f32
    %59 = vector.broadcast %cst_24 : f32 to vector<8x128xf32>
    %60 = arith.maximumf %58, %59 : vector<8x128xf32>
    %c4 = arith.constant 4 : index
    %c0_25 = arith.constant 0 : index
    %61 = vector.load %arg3[%c4, %c0_25] : memref<6x128xf32, #tpu.memory_space<vmem>>, vector<1x128xf32>
    %c5 = arith.constant 5 : index
    %c0_26 = arith.constant 0 : index
    %62 = vector.load %arg3[%c5, %c0_26] : memref<6x128xf32, #tpu.memory_space<vmem>>, vector<1x128xf32>
    %63 = vector.broadcast %61 : vector<1x128xf32> to vector<8x128xf32>
    %64 = arith.mulf %60, %63 : vector<8x128xf32>
    %cst_27 = arith.constant dense<0.000000e+00> : vector<8xf32>
    %65 = vector.multi_reduction <add>, %64, %cst_27 [1] : vector<8x128xf32> to vector<8xf32>
    %66 = vector.shape_cast %65 : vector<8xf32> to vector<8x1xf32>
    %67 = vector.extract_strided_slice %62 {offsets = [0, 0], sizes = [1, 1], strides = [1, 1]} : vector<1x128xf32> to vector<1x1xf32>
    %68 = vector.broadcast %67 : vector<1x1xf32> to vector<8x1xf32>
    %69 = arith.addf %66, %68 : vector<8x1xf32>
    %c0_28 = arith.constant 0 : index
    %c0_29 = arith.constant 0 : index
    %70 = vector.load %arg4[%c0_28, %c0_29] : memref<8x1xf32, #tpu.memory_space<vmem>>, vector<8x1xf32>
    tpu.vector_store %arg4[%c0_28, %c0_29], %69 {strides = array<i32>} : memref<8x1xf32, #tpu.memory_space<vmem>>, vector<8x1xf32>,
    return
  }
}

</mosaic_0001>

<llo_original>
// kernel: value_net_forward.1
$region0: #{value_net_forward.1}
  #allocation0 [shape = 'u32[]', space=smem, size = 0x4, offset = 0x4, fixed_abs, tag = 'smem constant byte address 0x4 - core index']
  #allocation1 [shape = 'u32[144,128]{1,0:T(1,128)}', space=vmem, size = 0x12000, scoped, tag = 'internal scratch']
  %s0 = inlined_call_operand.hbm [shape: f32[8,32], index: 0, kind: input, shape index: {}]
  %s1 = inlined_call_operand.hbm [shape: bf16[32,128], index: 1, kind: input, shape index: {}]
  %s2 = inlined_call_operand.hbm [shape: bf16[128,128], index: 2, kind: input, shape index: {}]
  %s3 = inlined_call_operand.hbm [shape: f32[6,128], index: 3, kind: input, shape index: {}]
  %s4 = inlined_call_operand.vmem [shape: f32[8,1], index: 4, kind: output, shape index: {}]
  %s5 = sld [smem:[#allocation0]]
  $region42: #{value_net_forward.1} parent=0
    _
  %s7 = ssub.s32 1, %s5
  %s8 = scalar_select 0, %s7, %s5
  $region1: #{value_net_forward.1} parent=0
    #allocation2 [shape = 'u8[4096]{0}', space=vmem, size = 0x1000, scoped, tag = 'input window, operand 0, single buffered']
    #allocation3 [shape = 's32[1]{0}', space=sflag, size = 0x4, scoped, tag = 'scoped memory for value_net_forward.1']
    #allocation4 [shape = 'u8[8192]{0}', space=vmem, size = 0x2000, scoped, tag = 'input window, operand 1, single buffered']
    #allocation5 [shape = 's32[1]{0}', space=sflag, size = 0x4, scoped, tag = 'scoped memory for value_net_forward.1']
    #allocation6 [shape = 'u8[32768]{0}', space=vmem, size = 0x8000, scoped, tag = 'input window, operand 2, single buffered']
    #allocation7 [shape = 'u8[4096]{0}', space=vmem, size = 0x1000, scoped, tag = 'input window, operand 3, single buffered']
    #allocation8 [shape = 's32[1]{0}', space=sflag, size = 0x4, scoped, tag = 'scoped memory for value_net_forward.1']
    %9 = vsyncpa [#allocation3], 0
    %10 = vsyncpa [#allocation5], 0
    %11 = vsyncpa [#allocation8], 0
    // Predicated region
    $region2: #{value_net_forward.1} parent=1 // pred_check
      _
    $region3: #{value_net_forward.1} parent=1 // pred_check_branch
      %13 = sbr.rel (0) target = $region5
    $region4: #{value_net_forward.1} parent=1 // pred_region
      %s15 = ssub.s32 128, 128
      %16 = vsyncadd [#allocation3], %s15
      %s18 = sshll.u32 [#allocation2], 4
      %s19 = int_to_ptr.vmem [resolvable:$true] %s18
      %21 = dma.hbm_to_vmem [thread:$0]  %s0, 128, %s19, [#allocation3]
    $region5: #{value_net_forward.1} parent=1 // pred_fallthru
      _
    // Predicated region
    $region6: #{value_net_forward.1} parent=1 // pred_check
      _
    $region7: #{value_net_forward.1} parent=1 // pred_check_branch
      %23 = sbr.rel (0) target = $region9
    $region8: #{value_net_forward.1} parent=1 // pred_region
      %s25 = ssub.s32 256, 256
      %26 = vsyncadd [#allocation5], %s25
      %s27 = sshll.u32 [#allocation4], 4
      %s28 = int_to_ptr.vmem [resolvable:$true] %s27
      %33 = dma.hbm_to_vmem [thread:$0]  %s1, 256, %s28, [#allocation5], 64, 64, 4
    $region9: #{value_net_forward.1} parent=1 // pred_fallthru
      _
    // Predicated region
    $region10: #{value_net_forward.1} parent=1 // pred_check
      _
    $region11: #{value_net_forward.1} parent=1 // pred_check_branch
      %35 = sbr.rel (0) target = $region13
    $region12: #{value_net_forward.1} parent=1 // pred_region
      %s37 = ssub.s32 1024, 1024
      %38 = vsyncadd [#allocation5], %s37
      %s39 = sshll.u32 [#allocation6], 4
      %s40 = int_to_ptr.vmem [resolvable:$true] %s39
      %45 = dma.hbm_to_vmem [thread:$0]  %s2, 1024, %s40, [#allocation5], 64, 64, 4
    $region13: #{value_net_forward.1} parent=1 // pred_fallthru
      _
    // Predicated region
    $region14: #{value_net_forward.1} parent=1 // pred_check
      _
    $region15: #{value_net_forward.1} parent=1 // pred_check_branch
      %47 = sbr.rel (0) target = $region17
    $region16: #{value_net_forward.1} parent=1 // pred_region
      %s49 = ssub.s32 128, 128
      %50 = vsyncadd [#allocation8], %s49
      %s52 = sshll.u32 [#allocation7], 4
      %s53 = int_to_ptr.vmem [resolvable:$true] %s52
      %55 = dma.hbm_to_vmem [thread:$0]  %s3, 128, %s53, [#allocation8]
    $region17: #{value_net_forward.1} parent=1 // pred_fallthru
      _
    // Predicated region
    $region18: #{value_net_forward.1} parent=1 // pred_check
      _
    $region19: #{value_net_forward.1} parent=1 // pred_check_branch
      %57 = sbr.rel (0) target = $region21
    $region20: #{value_net_forward.1} parent=1 // pred_region
      %58 = dma.done [#allocation3], 128
    $region21: #{value_net_forward.1} parent=1 // pred_fallthru
      _
    // Predicated region
    $region22: #{value_net_forward.1} parent=1 // pred_check
      _
    $region23: #{value_net_forward.1} parent=1 // pred_check_branch
      %60 = sbr.rel (0) target = $region25
    $region24: #{value_net_forward.1} parent=1 // pred_region
      %61 = dma.done [#allocation5], 256
    $region25: #{value_net_forward.1} parent=1 // pred_fallthru
      _
    // Predicated region
    $region26: #{value_net_forward.1} parent=1 // pred_check
      _
    $region27: #{value_net_forward.1} parent=1 // pred_check_branch
      %63 = sbr.rel (0) target = $region29
    $region28: #{value_net_forward.1} parent=1 // pred_region
      %64 = dma.done [#allocation5], 1024
    $region29: #{value_net_forward.1} parent=1 // pred_fallthru
      _
    // Predicated region
    $region30: #{value_net_forward.1} parent=1 // pred_check
      _
    $region31: #{value_net_forward.1} parent=1 // pred_check_branch
      %66 = sbr.rel (0) target = $region33
    $region32: #{value_net_forward.1} parent=1 // pred_region
      %67 = dma.done [#allocation8], 128
    $region33: #{value_net_forward.1} parent=1 // pred_fallthru
      _
    %v69 = vld [vmem:[#allocation2] sm:$0xff]
    %v70 = vpack.c.bf16 %v69, %v69
    %v71 = vld [vmem:[#allocation4] sm:$0xf]
    %v72 = vld [vmem:[#allocation4 + $0x4] sm:$0xf]
    %v73 = vld [vmem:[#allocation4 + $0x8] sm:$0xf]
    %v74 = vld [vmem:[#allocation4 + $0xc] sm:$0xf]
    %v79 = vunpack.c.l.b16 %v71
    %v80 = vunpack.c.l.b16 %v72
    %v81 = vunpack.c.l.b16 %v73
    %v82 = vunpack.c.l.b16 %v74
    %v83 = vpack.c.b16 %v80, %v79
    %v84 = vpack.c.b16 %v82, %v81
    %vm87 = vcmask 261120
    %v89 = vsel %vm87, %v70, 0
    %91 = vmatprep.subr.bf16.mxu0 0
    %92 = vmatpush1.bf16.msra.mxu0 0
    %93 = vmatprep.subr.bf16.mxu0 0
    %94 = vmatpush1.bf16.msra.mxu0 0
    %95 = vmatprep.subr.bf16.mxu0 0
    %96 = vmatpush1.bf16.msra.mxu0 0
    %97 = vmatprep.subr.bf16.mxu0 0
    %98 = vmatpush1.bf16.msra.mxu0 0
    %99 = vmatprep.subr.bf16.mxu0 0
    %100 = vmatpush1.bf16.msra.mxu0 0
    %101 = vmatprep.subr.bf16.mxu0 0
    %102 = vmatpush1.bf16.msra.mxu0 0
    %103 = vmatprep.subr.bf16.mxu0 0
    %104 = vmatpush1.bf16.msra.mxu0 %v84
    %105 = vmatprep.subr.bf16.mxu0 0
    %106 = vmatpush1.bf16.msra.mxu0 %v83
    %107 = vmatprep.subr.bf16.mxu0 0
    %108 = vmatpush2.bf16.msra.mxu0 0
    %109 = vmatprep.subr.bf16.mxu0 0
    %110 = vmatpush2.bf16.msra.mxu0 0
    %111 = vmatprep.subr.bf16.mxu0 0
    %112 = vmatpush2.bf16.msra.mxu0 0
    %113 = vmatprep.subr.bf16.mxu0 0
    %114 = vmatpush2.bf16.msra.mxu0 0
    %115 = vmatprep.subr.bf16.mxu0 0
    %116 = vmatpush2.bf16.msra.mxu0 0
    %117 = vmatprep.subr.bf16.mxu0 0
    %118 = vmatpush2.bf16.msra.mxu0 0
    %119 = vmatprep.subr.bf16.mxu0 0
    %120 = vmatpush2.bf16.msra.mxu0 0
    %121 = vmatprep.subr.bf16.mxu0 0
    %122 = vmatpush2.bf16.msra.mxu0 0
    %123 = vmatprep.mubr.bf16.mxu0 0
    %124 = vmatmul.mubr.bf16.gmra.mxu0 %v89
    %v125 = vpop.f32.mrf.mxu0
    %v126 = vadd.f32 0.0, %v125
    %v127 = vpop.f32.mrf.mxu0
    %v128 = vpop.f32.mrf.mxu0
    %v129 = vpop.f32.mrf.mxu0
    %130 = vdwg.mxu0
    %v131 = vld [vmem:[#allocation7] sm:$0x1]
    %v132 = vld [vmem:[#allocation7 + $0x1] sm:$0x1]
    %v133 = vrot.slane %v126, 4
    %v134 = vadd.f32 %v126, %v133
    %v135 = vrot.slane %v134, 2
    %v136 = vadd.f32 %v134, %v135
    %v137 = vrot.slane %v136, 1
    %v138 = vadd.f32 %v136, %v137
    %v139 = vmul.f32 %v138, 0.125
    %v140 = vmul.f32 %v126, %v126
    %v141 = vrot.slane %v140, 4
    %v142 = vadd.f32 %v140, %v141
    %v143 = vrot.slane %v142, 2
    %v144 = vadd.f32 %v142, %v143
    %v145 = vrot.slane %v144, 1
    %v146 = vadd.f32 %v144, %v145
    %v147 = vmul.f32 %v146, 0.125
    %v148 = vmul.f32 %v139, %v139
    %v149 = vsub.f32 %v147, %v148
    %v150 = vmax.f32 %v149, 0.0
    %v151 = vadd.f32 %v150, 1e-05
    %v152 = vrsqrt.pop %v151
    %v153 = vmul.f32 %v131, %v152
    %v154 = vmul.f32 %v139, %v153
    %v155 = vsub.f32 %v132, %v154
    %v156 = vlaneseq
    %v157 = vshrl.u32 %v156, 7
    %v158 = vsub.s32 0, %v157
    %v159 = vrot.slane %v153, %v158
    %v160 = vmul.f32 %v126, %v159
    %v161 = vlaneseq
    %v162 = vshrl.u32 %v161, 7
    %v163 = vsub.s32 0, %v162
    %v164 = vrot.slane %v155, %v163
    %v165 = vadd.f32 %v160, %v164
    %v166 = vmax.f32 %v165, 0.0
    %v167 = vpack.c.bf16 %v166, %v166
    %v168 = vld [vmem:[#allocation6] sm:$0xf]
    %v169 = vld [vmem:[#allocation6 + $0x4] sm:$0xf]
    %v170 = vld [vmem:[#allocation6 + $0x8] sm:$0xf]
    %v171 = vld [vmem:[#allocation6 + $0xc] sm:$0xf]
    %v172 = vld [vmem:[#allocation6 + $0x10] sm:$0xf]
    %v173 = vld [vmem:[#allocation6 + $0x14] sm:$0xf]
    %v174 = vld [vmem:[#allocation6 + $0x18] sm:$0xf]
    %v175 = vld [vmem:[#allocation6 + $0x1c] sm:$0xf]
    %v176 = vld [vmem:[#allocation6 + $0x20] sm:$0xf]
    %v177 = vld [vmem:[#allocation6 + $0x24] sm:$0xf]
    %v178 = vld [vmem:[#allocation6 + $0x28] sm:$0xf]
    %v179 = vld [vmem:[#allocation6 + $0x2c] sm:$0xf]
    %v180 = vld [vmem:[#allocation6 + $0x30] sm:$0xf]
    %v181 = vld [vmem:[#allocation6 + $0x34] sm:$0xf]
    %v182 = vld [vmem:[#allocation6 + $0x38] sm:$0xf]
    %v183 = vld [vmem:[#allocation6 + $0x3c] sm:$0xf]
    %v200 = vunpack.c.l.b16 %v168
    %v201 = vunpack.c.l.b16 %v169
    %v202 = vunpack.c.l.b16 %v170
    %v203 = vunpack.c.l.b16 %v171
    %v204 = vunpack.c.l.b16 %v172
    %v205 = vunpack.c.l.b16 %v173
    %v206 = vunpack.c.l.b16 %v174
    %v207 = vunpack.c.l.b16 %v175
    %v208 = vunpack.c.l.b16 %v176
    %v209 = vunpack.c.l.b16 %v177
    %v210 = vunpack.c.l.b16 %v178
    %v211 = vunpack.c.l.b16 %v179
    %v212 = vunpack.c.l.b16 %v180
    %v213 = vunpack.c.l.b16 %v181
    %v214 = vunpack.c.l.b16 %v182
    %v215 = vunpack.c.l.b16 %v183
    %v216 = vpack.c.b16 %v201, %v200
    %v217 = vpack.c.b16 %v203, %v202
    %v218 = vpack.c.b16 %v205, %v204
    %v219 = vpack.c.b16 %v207, %v206
    %v220 = vpack.c.b16 %v209, %v208
    %v221 = vpack.c.b16 %v211, %v210
    %v222 = vpack.c.b16 %v213, %v212
    %v223 = vpack.c.b16 %v215, %v214
    %232 = vmatprep.subr.bf16.mxu0 0
    %233 = vmatpush1.bf16.msra.mxu0 %v223
    %234 = vmatprep.subr.bf16.mxu0 0
    %235 = vmatpush1.bf16.msra.mxu0 %v222
    %236 = vmatprep.subr.bf16.mxu0 0
    %237 = vmatpush1.bf16.msra.mxu0 %v221
    %238 = vmatprep.subr.bf16.mxu0 0
    %239 = vmatpush1.bf16.msra.mxu0 %v220
    %240 = vmatprep.subr.bf16.mxu0 0
    %241 = vmatpush1.bf16.msra.mxu0 %v219
    %242 = vmatprep.subr.bf16.mxu0 0
    %243 = vmatpush1.bf16.msra.mxu0 %v218
    %244 = vmatprep.subr.bf16.mxu0 0
    %245 = vmatpush1.bf16.msra.mxu0 %v217
    %246 = vmatprep.subr.bf16.mxu0 0
    %247 = vmatpush1.bf16.msra.mxu0 %v216
    %248 = vmatprep.subr.bf16.mxu0 0
    %249 = vmatpush2.bf16.msra.mxu0 0
    %250 = vmatprep.subr.bf16.mxu0 0
    %251 = vmatpush2.bf16.msra.mxu0 0
    %252 = vmatprep.subr.bf16.mxu0 0
    %253 = vmatpush2.bf16.msra.mxu0 0
    %254 = vmatprep.subr.bf16.mxu0 0
    %255 = vmatpush2.bf16.msra.mxu0 0
    %256 = vmatprep.subr.bf16.mxu0 0
    %257 = vmatpush2.bf16.msra.mxu0 0
    %258 = vmatprep.subr.bf16.mxu0 0
    %259 = vmatpush2.bf16.msra.mxu0 0
    %260 = vmatprep.subr.bf16.mxu0 0
    %261 = vmatpush2.bf16.msra.mxu0 0
    %262 = vmatprep.subr.bf16.mxu0 0
    %263 = vmatpush2.bf16.msra.mxu0 0
    %264 = vmatprep.mubr.bf16.mxu0 0
    %265 = vmatmul.mubr.bf16.gmra.mxu0 %v167
    %v266 = vpop.f32.mrf.mxu0
    %v267 = vadd.f32 0.0, %v266
    %v268 = vpop.f32.mrf.mxu0
    %v269 = vpop.f32.mrf.mxu0
    %v270 = vpop.f32.mrf.mxu0
    %271 = vdwg.mxu0
    %v272 = vld [vmem:[#allocation7 + $0x2] sm:$0x1]
    %v273 = vld [vmem:[#allocation7 + $0x3] sm:$0x1]
    %v274 = vrot.slane %v267, 4
    %v275 = vadd.f32 %v267, %v274
    %v276 = vrot.slane %v275, 2
    %v277 = vadd.f32 %v275, %v276
    %v278 = vrot.slane %v277, 1
    %v279 = vadd.f32 %v277, %v278
    %v280 = vmul.f32 %v279, 0.125
    %v281 = vmul.f32 %v267, %v267
    %v282 = vrot.slane %v281, 4
    %v283 = vadd.f32 %v281, %v282
    %v284 = vrot.slane %v283, 2
    %v285 = vadd.f32 %v283, %v284
    %v286 = vrot.slane %v285, 1
    %v287 = vadd.f32 %v285, %v286
    %v288 = vmul.f32 %v287, 0.125
    %v289 = vmul.f32 %v280, %v280
    %v290 = vsub.f32 %v288, %v289
    %v291 = vmax.f32 %v290, 0.0
    %v292 = vadd.f32 %v291, 1e-05
    %v293 = vrsqrt.pop %v292
    %v294 = vmul.f32 %v272, %v293
    %v295 = vmul.f32 %v280, %v294
    %v296 = vsub.f32 %v273, %v295
    %v297 = vlaneseq
    %v298 = vshrl.u32 %v297, 7
    %v299 = vsub.s32 0, %v298
    %v300 = vrot.slane %v294, %v299
    %v301 = vmul.f32 %v267, %v300
    %v302 = vlaneseq
    %v303 = vshrl.u32 %v302, 7
    %v304 = vsub.s32 0, %v303
    %v305 = vrot.slane %v296, %v304
    %v306 = vadd.f32 %v301, %v305
    %v307 = vmax.f32 %v306, 0.0
    %v308 = vld [vmem:[#allocation7 + $0x4] sm:$0x1]
    %v309 = vld [vmem:[#allocation7 + $0x5] sm:$0x1]
    %v310 = vlaneseq
    %v311 = vshrl.u32 %v310, 7
    %v312 = vsub.s32 0, %v311
    %v313 = vrot.slane %v308, %v312
    %v314 = vmul.f32 %v307, %v313
    %315 = vadd.xlane.f32.xlu0 %v314
    %v316 = vpop.xlane.xlu0 %315
    %v317 = vlaneseq
    %v318 = vshrl.u32 %v317, 7
    %v319 = vsub.s32 0, %v318
    %v320 = vrot.slane %v309, %v319
    %v321 = vadd.f32 %v316, %v320
    %vm322 = vcmask 7168
    %323 = vst.msk [vmem:[%s4] sm:$0xff] %vm322, %v321
    // Predicated region
    $region34: #{value_net_forward.1} parent=1 // pred_check
      _
    $region35: #{value_net_forward.1} parent=1 // pred_check_branch
      %325 = sbr.rel (0) target = $region37
    $region36: #{value_net_forward.1} parent=1 // pred_region
      _
    $region37: #{value_net_forward.1} parent=1 // pred_fallthru
      _
    // Predicated region
    $region38: #{value_net_forward.1} parent=1 // pred_check
      _
    $region39: #{value_net_forward.1} parent=1 // pred_check_branch
      %327 = sbr.rel (0) target = $region41
    $region40: #{value_net_forward.1} parent=1 // pred_region
      _
    $region41: #{value_net_forward.1} parent=1 // pred_fallthru
      _
    %328 = vsyncpa [#allocation3], 1
    %329 = vsyncpa [#allocation5], 1
    %330 = vsyncpa [#allocation8], 1

</llo_original>
